<compile_context>
chip_gen: v7x
topology: tpu7x:2x2x1
jax: 0.10.0
libtpu: 0.0.40
codegen_flags: <defaults>
</compile_context>

<pallas_src>
import numpy as np
import jax
import jax.numpy as jnp
from jax.experimental import pallas as pl
from jax.experimental.pallas import tpu as pltpu


# ---------------------------------------------------------------------------
# Constants (match the PyTorch reference; computed in float64, cast to f32).
# ---------------------------------------------------------------------------
_XN, _YN, _ZN = 95.0489, 100.0, 108.884          # D65 white point
_RGB2XYZ = np.array([[0.412453, 0.35758, 0.180423],
                     [0.212671, 0.71516, 0.072169],
                     [0.019334, 0.119193, 0.950227]], dtype=np.float64)
# Fold the white-point normalisation into the mix constants (saves ops/px).
# Rows of _MIX: X/Xn, Y/Yn, Z/Zn ; columns: r, g, b.
_MIX = (_RGB2XYZ / np.array([[_XN], [_YN], [_ZN]], dtype=np.float64)).astype(np.float32)

_DELTA = 6.0 / 29.0
_DELTA_CUBED = np.float32(_DELTA ** 3)
_INV_C1 = np.float32(1.0 / (3.0 * _DELTA ** 2))   # 1 / (3 * delta^2)
_C2 = np.float32(4.0 / 29.0)
_ONE_THIRD = np.float32(1.0 / 3.0)

_MAX_BLOCK_BYTES = 3 * 1024 * 1024   # per-array block: 2x(in+out) buffers + temps << 48 MiB
_MAX_BC = 6144                       # lane-block cap: multiple of 384 (= 3 channels x 128 lanes)


def _roll_lanes(x, shift):
    """np.roll-style rotation along the lane (last) axis on the XLU."""
    width = x.shape[-1]
    return pltpu.roll(x, shift % width, axis=x.ndim - 1)


def _rgb2lab_kernel(x_ref, o_ref):
    # x_ref / o_ref: (TR, BC) f32, lanes hold interleaved [r, g, b, r, g, b, ...].
    # BC and every block's global column offset are multiples of 3, so the
    # lane-periodic (period-3) pattern below is identical for every block.
    x = x_ref[...]
    bc = x.shape[-1]

    # lane % 3 as float (exact: bc <= _MAX_BC << 2^22), built once on a
    # (1, BC) row and sublane-broadcast into the big ops (cheap, amortised).
    lane = jax.lax.broadcasted_iota(jnp.int32, (1, bc), 1).astype(jnp.float32)
    rem = lane - 3.0 * jnp.floor(lane * _ONE_THIRD)
    is_c0 = rem < 0.5                                   # lane holds R -> emits L*
    is_c1 = jnp.logical_and(rem > 0.5, rem < 1.5)       # lane holds G -> emits a*
    #                                                    lane holds B -> emits b*

    def per_lane(v0, v1, v2):
        return jnp.where(is_c0, jnp.float32(v0),
                         jnp.where(is_c1, jnp.float32(v1), jnp.float32(v2)))

    m = _MIX
    # t[lane]: 3k -> Y/Yn, 3k+1 -> X/Xn, 3k+2 -> Z/Zn of pixel k.  Each lane
    # gathers its pixel's (r, g, b) neighbours via static XLU rolls and applies
    # the matching (whitepoint-folded) mix coefficient; all FMAs on the VPU.
    t = per_lane(m[1, 0], m[0, 1], m[2, 2]) * x
    t = t + per_lane(m[1, 1], m[0, 2], 0.0) * _roll_lanes(x, -1)   # x[l+1]
    t = t + per_lane(m[1, 2], 0.0, 0.0) * _roll_lanes(x, -2)       # x[l+2]
    t = t + per_lane(0.0, m[0, 0], m[2, 1]) * _roll_lanes(x, 1)    # x[l-1]
    t = t + per_lane(0.0, 0.0, m[2, 0]) * _roll_lanes(x, 2)        # x[l-2]

    # CIELAB f(): cube root rides the EUP as exp(log(t)/3); clamp BEFORE the
    # log so the always-evaluated branch never sees t <= 0.  Linear branch on
    # the VPU.  Exactly 2 transcendentals per lane = 6 per pixel.
    cbrt = jnp.exp(jnp.log(jnp.maximum(t, 1e-6)) * _ONE_THIRD)
    linear = t * _INV_C1 + _C2
    f_own = jnp.where(t > _DELTA_CUBED, cbrt, linear)   # 3k: fY, 3k+1: fX, 3k+2: fZ

    # Outputs stay interleaved: 3k -> L*, 3k+1 -> a*, 3k+2 -> b*.  fY (lane 3k)
    # is fetched at lanes 3k+1 / 3k+2 via two more XLU rolls.
    out = per_lane(116.0, 500.0, -200.0) * f_own
    out = out + per_lane(0.0, -500.0, 0.0) * _roll_lanes(f_own, 1)
    out = out + per_lane(0.0, 0.0, 200.0) * _roll_lanes(f_own, 2)
    out = out + per_lane(-16.0, 0.0, 0.0)
    o_ref[...] = out


def _round_up(x, m):
    return (x + m - 1) // m * m


def rgb_to_cielab(v):
    """Pallas Rgb2CieLAB forward. `v` has shape (..., 3), float RGB."""
    assert v.shape[-1] == 3
    orig_shape = v.shape
    v = v.astype(jnp.float32)
    pixel_dims = tuple(int(d) for d in orig_shape[:-1])

    # ---- Split pixel dims into (rows, lane-pixels) with FREE reshapes only. --
    # Trailing pixel dims are folded into the lane axis until a row of
    # interleaved channels reaches ~_MAX_BC lanes; the rest become rows.
    lane_px = 1
    split = len(pixel_dims)
    for i in range(len(pixel_dims) - 1, -1, -1):
        d = pixel_dims[i]
        if lane_px > 1 and lane_px * d * 3 > _MAX_BC:
            break
        lane_px *= d
        split = i
    rows = int(np.prod(pixel_dims[:split], dtype=np.int64)) if split > 0 else 1
    rows = max(rows, 1)
    c3 = lane_px * 3
    x2d = v.reshape(rows, c3)            # row-major relabel: no data movement

    # ---- Column (lane) blocking: whole pixels, 128-lane aligned when tiled. --
    bc = c3 if c3 <= _MAX_BC else _MAX_BC          # _MAX_BC is a multiple of 384
    grid_c = pl.cdiv(c3, bc)

    # ---- Row blocking: VMEM budget + >=2 steps for v7x megacore when possible.
    tr_budget = max(8, (_MAX_BLOCK_BYTES // (bc * 4)) // 8 * 8)
    if rows <= tr_budget:
        tr = rows if rows < 16 else _round_up((rows + 1) // 2, 8)
    else:
        tr = tr_budget
    grid_r = pl.cdiv(rows, tr)

    total = rows * c3
    out2d = pl.pallas_call(
        _rgb2lab_kernel,
        out_shape=jax.ShapeDtypeStruct((rows, c3), jnp.float32),
        grid=(grid_r, grid_c),
        in_specs=[pl.BlockSpec((tr, bc), lambda i, j: (i, j))],
        out_specs=pl.BlockSpec((tr, bc), lambda i, j: (i, j)),
        compiler_params=pltpu.CompilerParams(
            dimension_semantics=("parallel", "parallel"),  # shards on v7x's 2 TCs
            vmem_limit_bytes=48 * 1024 * 1024,             # v5e default is only 16 MiB
        ),
        cost_estimate=pl.CostEstimate(
            flops=22 * total,            # ~VPU ops per lane element
            transcendentals=2 * total,   # log + exp per lane element
            bytes_accessed=2 * total * 4,
        ),
    )(x2d)

    return out2d.reshape(orig_shape)     # free reshape back to (..., 3)


# ---------------------------------------------------------------------------
# Pure-JAX reference (literal transcription of the PyTorch module) for a
# sanity check.
# ---------------------------------------------------------------------------
def _reference_rgb_to_cielab(v):
    r, g, b = v[..., 0], v[..., 1], v[..., 2]
    x = 0.412453 * r + 0.35758 * g + 0.180423 * b
    y = 0.212671 * r + 0.71516 * g + 0.072169 * b
    z = 0.019334 * r + 0.119193 * g + 0.950227 * b
    delta = 6.0 / 29.0

    def f(t):
        cbrt = jnp.power(jnp.clip(t, 1e-6), 1.0 / 3.0)
        linear = t / (3.0 * delta ** 2) + 4.0 / 29.0
        return jnp.where(t > delta ** 3, cbrt, linear)

    fx, fy, fz = f(x / 95.0489), f(y / 100.0), f(z / 108.884)
    return jnp.stack((116.0 * fy - 16.0,
                      500.0 * (fx - fy),
                      200.0 * (fy - fz)), axis=-1)


if __name__ == "__main__":
    key = jax.random.PRNGKey(0)
    x = jax.random.uniform(key, (2, 16, 16, 3), dtype=jnp.float32)  # RGB in [0, 1)

    out = jax.block_until_ready(jax.jit(rgb_to_cielab)(x))

    ref = _reference_rgb_to_cielab(x)
    np.testing.assert_allclose(np.asarray(out), np.asarray(ref),
                               rtol=1e-4, atol=1e-2)

    print("KERNEL_OK")
</pallas_src>

<mosaic_0001>
module attributes {stable_mosaic.version = 11 : i64} {
  func.func @_rgb2lab_kernel(%arg0: i32, %arg1: i32, %arg2: memref<1x1536xf32, #tpu.memory_space<vmem>>, %arg3: memref<1x1536xf32, #tpu.memory_space<vmem>>) attributes {dimension_semantics = [#tpu.dimension_semantics<parallel>, #tpu.dimension_semantics<parallel>], iteration_bounds = array<i64: 1, 1>, scalar_prefetch = 0 : i64, scratch_operands = 0 : i64, tpu.core_type = #tpu.core_type<tc>, window_params = [{transform_indices = @transform_0, window_bounds = array<i64: 1, 1536>}, {transform_indices = @transform_1, window_bounds = array<i64: 1, 1536>}]} {
    %c0 = arith.constant 0 : index
    %c0_0 = arith.constant 0 : index
    %0 = vector.load %arg2[%c0, %c0_0] : memref<1x1536xf32, #tpu.memory_space<vmem>>, vector<1x1536xf32>
    %1 = tpu.iota {dimensions = array<i32: 1>} : vector<1x1536xi32>
    %2 = arith.sitofp %1 : vector<1x1536xi32> to vector<1x1536xf32>
    %cst = arith.constant 0.333333343 : f32
    %3 = vector.broadcast %cst : f32 to vector<1x1536xf32>
    %4 = arith.mulf %2, %3 : vector<1x1536xf32>
    %5 = math.floor %4 : vector<1x1536xf32>
    %cst_1 = arith.constant 3.000000e+00 : f32
    %6 = vector.broadcast %cst_1 : f32 to vector<1x1536xf32>
    %7 = arith.mulf %6, %5 : vector<1x1536xf32>
    %8 = arith.subf %2, %7 : vector<1x1536xf32>
    %cst_2 = arith.constant 5.000000e-01 : f32
    %9 = vector.broadcast %cst_2 : f32 to vector<1x1536xf32>
    %10 = arith.cmpf olt, %8, %9 : vector<1x1536xf32>
    %cst_3 = arith.constant 5.000000e-01 : f32
    %11 = vector.broadcast %cst_3 : f32 to vector<1x1536xf32>
    %12 = arith.cmpf ogt, %8, %11 : vector<1x1536xf32>
    %cst_4 = arith.constant 1.500000e+00 : f32
    %13 = vector.broadcast %cst_4 : f32 to vector<1x1536xf32>
    %14 = arith.cmpf olt, %8, %13 : vector<1x1536xf32>
    %15 = arith.andi %12, %14 : vector<1x1536xi1>
    %cst_5 = arith.constant 0.00376206357 : f32
    %cst_6 = arith.constant 0.00872696657 : f32
    %16 = vector.broadcast %cst_5 : f32 to vector<1x1536xf32>
    %17 = vector.broadcast %cst_6 : f32 to vector<1x1536xf32>
    %18 = arith.select %15, %16, %17 : vector<1x1536xi1>, vector<1x1536xf32>
    %cst_7 = arith.constant 2.126710e-03 : f32
    %19 = vector.broadcast %cst_7 : f32 to vector<1x1536xf32>
    %20 = arith.select %10, %19, %18 : vector<1x1536xi1>, vector<1x1536xf32>
    %21 = arith.mulf %20, %0 : vector<1x1536xf32>
    %cst_8 = arith.constant 0.00189821236 : f32
    %cst_9 = arith.constant 0.000000e+00 : f32
    %22 = vector.broadcast %cst_8 : f32 to vector<1x1536xf32>
    %23 = vector.broadcast %cst_9 : f32 to vector<1x1536xf32>
    %24 = arith.select %15, %22, %23 : vector<1x1536xi1>, vector<1x1536xf32>
    %cst_10 = arith.constant 7.151600e-03 : f32
    %25 = vector.broadcast %cst_10 : f32 to vector<1x1536xf32>
    %26 = arith.select %10, %25, %24 : vector<1x1536xi1>, vector<1x1536xf32>
    %c1535_i32 = arith.constant 1535 : i32
    %27 = tpu.dynamic_rotate %0 by %c1535_i32 dim 1 : vector<1x1536xf32>, i32 -> vector<1x1536xf32>
    %28 = arith.mulf %26, %27 : vector<1x1536xf32>
    %29 = arith.addf %21, %28 : vector<1x1536xf32>
    %cst_11 = arith.constant 0.000000e+00 : f32
    %cst_12 = arith.constant 0.000000e+00 : f32
    %30 = vector.broadcast %cst_11 : f32 to vector<1x1536xf32>
    %31 = vector.broadcast %cst_12 : f32 to vector<1x1536xf32>
    %32 = arith.select %15, %30, %31 : vector<1x1536xi1>, vector<1x1536xf32>
    %cst_13 = arith.constant 7.216900e-04 : f32
    %33 = vector.broadcast %cst_13 : f32 to vector<1x1536xf32>
    %34 = arith.select %10, %33, %32 : vector<1x1536xi1>, vector<1x1536xf32>
    %c1534_i32 = arith.constant 1534 : i32
    %35 = tpu.dynamic_rotate %0 by %c1534_i32 dim 1 : vector<1x1536xf32>, i32 -> vector<1x1536xf32>
    %36 = arith.mulf %34, %35 : vector<1x1536xf32>
    %37 = arith.addf %29, %36 : vector<1x1536xf32>
    %cst_14 = arith.constant 0.00433937693 : f32
    %cst_15 = arith.constant 0.00109467877 : f32
    %38 = vector.broadcast %cst_14 : f32 to vector<1x1536xf32>
    %39 = vector.broadcast %cst_15 : f32 to vector<1x1536xf32>
    %40 = arith.select %15, %38, %39 : vector<1x1536xi1>, vector<1x1536xf32>
    %cst_16 = arith.constant 0.000000e+00 : f32
    %41 = vector.broadcast %cst_16 : f32 to vector<1x1536xf32>
    %42 = arith.select %10, %41, %40 : vector<1x1536xi1>, vector<1x1536xf32>
    %c1_i32 = arith.constant 1 : i32
    %43 = tpu.dynamic_rotate %0 by %c1_i32 dim 1 : vector<1x1536xf32>, i32 -> vector<1x1536xf32>
    %44 = arith.mulf %42, %43 : vector<1x1536xf32>
    %45 = arith.addf %37, %44 : vector<1x1536xf32>
    %cst_17 = arith.constant 0.000000e+00 : f32
    %cst_18 = arith.constant 1.77565118E-4 : f32
    %46 = vector.broadcast %cst_17 : f32 to vector<1x1536xf32>
    %47 = vector.broadcast %cst_18 : f32 to vector<1x1536xf32>
    %48 = arith.select %15, %46, %47 : vector<1x1536xi1>, vector<1x1536xf32>
    %cst_19 = arith.constant 0.000000e+00 : f32
    %49 = vector.broadcast %cst_19 : f32 to vector<1x1536xf32>
    %50 = arith.select %10, %49, %48 : vector<1x1536xi1>, vector<1x1536xf32>
    %c2_i32 = arith.constant 2 : i32
    %51 = tpu.dynamic_rotate %0 by %c2_i32 dim 1 : vector<1x1536xf32>, i32 -> vector<1x1536xf32>
    %52 = arith.mulf %50, %51 : vector<1x1536xf32>
    %53 = arith.addf %45, %52 : vector<1x1536xf32>
    %cst_20 = arith.constant 9.99999997E-7 : f32
    %54 = vector.broadcast %cst_20 : f32 to vector<1x1536xf32>
    %55 = arith.maximumf %53, %54 : vector<1x1536xf32>
    %56 = math.log %55 : vector<1x1536xf32>
    %cst_21 = arith.constant 0.333333343 : f32
    %57 = vector.broadcast %cst_21 : f32 to vector<1x1536xf32>
    %58 = arith.mulf %56, %57 : vector<1x1536xf32>
    %59 = math.exp %58 : vector<1x1536xf32>
    %cst_22 = arith.constant 7.7870369 : f32
    %60 = vector.broadcast %cst_22 : f32 to vector<1x1536xf32>
    %61 = arith.mulf %53, %60 : vector<1x1536xf32>
    %cst_23 = arith.constant 0.137931034 : f32
    %62 = vector.broadcast %cst_23 : f32 to vector<1x1536xf32>
    %63 = arith.addf %61, %62 : vector<1x1536xf32>
    %cst_24 = arith.constant 0.00885645207 : f32
    %64 = vector.broadcast %cst_24 : f32 to vector<1x1536xf32>
    %65 = arith.cmpf ogt, %53, %64 : vector<1x1536xf32>
    %66 = arith.select %65, %59, %63 : vector<1x1536xi1>, vector<1x1536xf32>
    %cst_25 = arith.constant 5.000000e+02 : f32
    %cst_26 = arith.constant -2.000000e+02 : f32
    %67 = vector.broadcast %cst_25 : f32 to vector<1x1536xf32>
    %68 = vector.broadcast %cst_26 : f32 to vector<1x1536xf32>
    %69 = arith.select %15, %67, %68 : vector<1x1536xi1>, vector<1x1536xf32>
    %cst_27 = arith.constant 1.160000e+02 : f32
    %70 = vector.broadcast %cst_27 : f32 to vector<1x1536xf32>
    %71 = arith.select %10, %70, %69 : vector<1x1536xi1>, vector<1x1536xf32>
    %72 = arith.mulf %71, %66 : vector<1x1536xf32>
    %cst_28 = arith.constant -5.000000e+02 : f32
    %cst_29 = arith.constant 0.000000e+00 : f32
    %73 = vector.broadcast %cst_28 : f32 to vector<1x1536xf32>
    %74 = vector.broadcast %cst_29 : f32 to vector<1x1536xf32>
    %75 = arith.select %15, %73, %74 : vector<1x1536xi1>, vector<1x1536xf32>
    %cst_30 = arith.constant 0.000000e+00 : f32
    %76 = vector.broadcast %cst_30 : f32 to vector<1x1536xf32>
    %77 = arith.select %10, %76, %75 : vector<1x1536xi1>, vector<1x1536xf32>
    %c1_i32_31 = arith.constant 1 : i32
    %78 = tpu.dynamic_rotate %66 by %c1_i32_31 dim 1 : vector<1x1536xf32>, i32 -> vector<1x1536xf32>
    %79 = arith.mulf %77, %78 : vector<1x1536xf32>
    %80 = arith.addf %72, %79 : vector<1x1536xf32>
    %cst_32 = arith.constant 0.000000e+00 : f32
    %cst_33 = arith.constant 2.000000e+02 : f32
    %81 = vector.broadcast %cst_32 : f32 to vector<1x1536xf32>
    %82 = vector.broadcast %cst_33 : f32 to vector<1x1536xf32>
    %83 = arith.select %15, %81, %82 : vector<1x1536xi1>, vector<1x1536xf32>
    %cst_34 = arith.constant 0.000000e+00 : f32
    %84 = vector.broadcast %cst_34 : f32 to vector<1x1536xf32>
    %85 = arith.select %10, %84, %83 : vector<1x1536xi1>, vector<1x1536xf32>
    %c2_i32_35 = arith.constant 2 : i32
    %86 = tpu.dynamic_rotate %66 by %c2_i32_35 dim 1 : vector<1x1536xf32>, i32 -> vector<1x1536xf32>
    %87 = arith.mulf %85, %86 : vector<1x1536xf32>
    %88 = arith.addf %80, %87 : vector<1x1536xf32>
    %cst_36 = arith.constant 0.000000e+00 : f32
    %cst_37 = arith.constant 0.000000e+00 : f32
    %89 = vector.broadcast %cst_36 : f32 to vector<1x1536xf32>
    %90 = vector.broadcast %cst_37 : f32 to vector<1x1536xf32>
    %91 = arith.select %15, %89, %90 : vector<1x1536xi1>, vector<1x1536xf32>
    %cst_38 = arith.constant -1.600000e+01 : f32
    %92 = vector.broadcast %cst_38 : f32 to vector<1x1536xf32>
    %93 = arith.select %10, %92, %91 : vector<1x1536xi1>, vector<1x1536xf32>
    %94 = arith.addf %88, %93 : vector<1x1536xf32>
    %c0_39 = arith.constant 0 : index
    %c0_40 = arith.constant 0 : index
    %95 = vector.load %arg3[%c0_39, %c0_40] : memref<1x1536xf32, #tpu.memory_space<vmem>>, vector<1x1536xf32>
    tpu.vector_store %arg3[%c0_39, %c0_40], %94 {strides = array<i32>} : memref<1x1536xf32, #tpu.memory_space<vmem>>, vector<1x1536xf32>,
    return
  }
  func.func @transform_0(%arg0: i32, %arg1: i32) -> (i32, i32) {
    %c0_i32 = arith.constant 0 : i32
    return %arg0, %arg1 : i32, i32
  }
  func.func @transform_1(%arg0: i32, %arg1: i32) -> (i32, i32) {
    %c0_i32 = arith.constant 0 : i32
    return %arg0, %arg1 : i32, i32
  }
}

</mosaic_0001>

<llo_original>
// kernel: rgb_to_cielab.1
$region0: #{rgb_to_cielab.1}
  #allocation0 [shape = 'u32[]', space=smem, size = 0x4, offset = 0x4, fixed_abs, tag = 'smem constant byte address 0x4 - core index']
  #allocation1 [shape = 'u32[144,128]{1,0:T(1,128)}', space=vmem, size = 0x12000, scoped, tag = 'internal scratch']
  %s0 = inlined_call_operand.vmem [shape: f32[1,1536], index: 0, kind: input, shape index: {}]
  %s1 = inlined_call_operand.vmem [shape: f32[1,1536], index: 1, kind: output, shape index: {}]
  %s2 = sld [smem:[#allocation0]]
  $region14: #{rgb_to_cielab.1} parent=0
    _
  %s4 = ssub.s32 1, %s2
  %s5 = scalar_select 0, %s4, %s2
  // Predicated region
  $region2: #{rgb_to_cielab.1} parent=0 // pred_check
    _
  $region3: #{rgb_to_cielab.1} parent=0 // pred_check_branch
    %7 = sbr.rel (0) target = $region5
  $region4: #{rgb_to_cielab.1} parent=0 // pred_region
    _
  $region5: #{rgb_to_cielab.1} parent=0 // pred_fallthru
    _
  %v8 = vld [vmem:[%s0] sm:$0xff]
  %v9 = vld [vmem:[%s0 + $0x8] sm:$0xf]
  %v10 = vlaneseq
  %v11 = vand.u32 %v10, 127
  %v12 = vadd.s32 %v11, 128
  %v13 = vadd.s32 %v11, 256
  %v14 = vadd.s32 %v11, 384
  %v15 = vadd.s32 %v11, 512
  %v16 = vadd.s32 %v11, 640
  %v17 = vadd.s32 %v11, 768
  %v18 = vadd.s32 %v11, 896
  %v19 = vadd.s32 %v11, 1024
  %v20 = vadd.s32 %v11, 1152
  %v21 = vadd.s32 %v11, 1280
  %v22 = vadd.s32 %v11, 1408
  %v23 = vcvt.s32.f32 %v11
  %v24 = vcvt.s32.f32 %v12
  %v25 = vcvt.s32.f32 %v13
  %v26 = vcvt.s32.f32 %v14
  %v27 = vcvt.s32.f32 %v15
  %v28 = vcvt.s32.f32 %v16
  %v29 = vcvt.s32.f32 %v17
  %v30 = vcvt.s32.f32 %v18
  %v31 = vcvt.s32.f32 %v19
  %v32 = vcvt.s32.f32 %v20
  %v33 = vcvt.s32.f32 %v21
  %v34 = vcvt.s32.f32 %v22
  %v35 = vmul.f32 %v23, 0.33333334
  %v36 = vmul.f32 %v24, 0.33333334
  %v37 = vmul.f32 %v25, 0.33333334
  %v38 = vmul.f32 %v26, 0.33333334
  %v39 = vmul.f32 %v27, 0.33333334
  %v40 = vmul.f32 %v28, 0.33333334
  %v41 = vmul.f32 %v29, 0.33333334
  %v42 = vmul.f32 %v30, 0.33333334
  %v43 = vmul.f32 %v31, 0.33333334
  %v44 = vmul.f32 %v32, 0.33333334
  %v45 = vmul.f32 %v33, 0.33333334
  %v46 = vmul.f32 %v34, 0.33333334
  %v47 = vfloor.f32 %v35
  %v48 = vfloor.f32 %v36
  %v49 = vfloor.f32 %v37
  %v50 = vfloor.f32 %v38
  %v51 = vfloor.f32 %v39
  %v52 = vfloor.f32 %v40
  %v53 = vfloor.f32 %v41
  %v54 = vfloor.f32 %v42
  %v55 = vfloor.f32 %v43
  %v56 = vfloor.f32 %v44
  %v57 = vfloor.f32 %v45
  %v58 = vfloor.f32 %v46
  %v59 = vmul.f32 %v47, 3.0
  %v60 = vmul.f32 %v48, 3.0
  %v61 = vmul.f32 %v49, 3.0
  %v62 = vmul.f32 %v50, 3.0
  %v63 = vmul.f32 %v51, 3.0
  %v64 = vmul.f32 %v52, 3.0
  %v65 = vmul.f32 %v53, 3.0
  %v66 = vmul.f32 %v54, 3.0
  %v67 = vmul.f32 %v55, 3.0
  %v68 = vmul.f32 %v56, 3.0
  %v69 = vmul.f32 %v57, 3.0
  %v70 = vmul.f32 %v58, 3.0
  %v71 = vsub.f32 %v23, %v59
  %v72 = vsub.f32 %v24, %v60
  %v73 = vsub.f32 %v25, %v61
  %v74 = vsub.f32 %v26, %v62
  %v75 = vsub.f32 %v27, %v63
  %v76 = vsub.f32 %v28, %v64
  %v77 = vsub.f32 %v29, %v65
  %v78 = vsub.f32 %v30, %v66
  %v79 = vsub.f32 %v31, %v67
  %v80 = vsub.f32 %v32, %v68
  %v81 = vsub.f32 %v33, %v69
  %v82 = vsub.f32 %v34, %v70
  %vm83 = vcmp.lt.f32.partialorder %v71, 0.5
  %vm84 = vcmp.lt.f32.partialorder %v72, 0.5
  %vm85 = vcmp.lt.f32.partialorder %v73, 0.5
  %vm86 = vcmp.lt.f32.partialorder %v74, 0.5
  %vm87 = vcmp.lt.f32.partialorder %v75, 0.5
  %vm88 = vcmp.lt.f32.partialorder %v76, 0.5
  %vm89 = vcmp.lt.f32.partialorder %v77, 0.5
  %vm90 = vcmp.lt.f32.partialorder %v78, 0.5
  %vm91 = vcmp.lt.f32.partialorder %v79, 0.5
  %vm92 = vcmp.lt.f32.partialorder %v80, 0.5
  %vm93 = vcmp.lt.f32.partialorder %v81, 0.5
  %vm94 = vcmp.lt.f32.partialorder %v82, 0.5
  %vm95 = vcmp.gt.f32.partialorder %v71, 0.5
  %vm96 = vcmp.gt.f32.partialorder %v72, 0.5
  %vm97 = vcmp.gt.f32.partialorder %v73, 0.5
  %vm98 = vcmp.gt.f32.partialorder %v74, 0.5
  %vm99 = vcmp.gt.f32.partialorder %v75, 0.5
  %vm100 = vcmp.gt.f32.partialorder %v76, 0.5
  %vm101 = vcmp.gt.f32.partialorder %v77, 0.5
  %vm102 = vcmp.gt.f32.partialorder %v78, 0.5
  %vm103 = vcmp.gt.f32.partialorder %v79, 0.5
  %vm104 = vcmp.gt.f32.partialorder %v80, 0.5
  %vm105 = vcmp.gt.f32.partialorder %v81, 0.5
  %vm106 = vcmp.gt.f32.partialorder %v82, 0.5
  %vm107 = vcmp.lt.f32.partialorder %v71, 1.5
  %vm108 = vcmp.lt.f32.partialorder %v72, 1.5
  %vm109 = vcmp.lt.f32.partialorder %v73, 1.5
  %vm110 = vcmp.lt.f32.partialorder %v74, 1.5
  %vm111 = vcmp.lt.f32.partialorder %v75, 1.5
  %vm112 = vcmp.lt.f32.partialorder %v76, 1.5
  %vm113 = vcmp.lt.f32.partialorder %v77, 1.5
  %vm114 = vcmp.lt.f32.partialorder %v78, 1.5
  %vm115 = vcmp.lt.f32.partialorder %v79, 1.5
  %vm116 = vcmp.lt.f32.partialorder %v80, 1.5
  %vm117 = vcmp.lt.f32.partialorder %v81, 1.5
  %vm118 = vcmp.lt.f32.partialorder %v82, 1.5
  %vm119 = vmand %vm95, %vm107
  %vm120 = vmand %vm96, %vm108
  %vm121 = vmand %vm97, %vm109
  %vm122 = vmand %vm98, %vm110
  %vm123 = vmand %vm99, %vm111
  %vm124 = vmand %vm100, %vm112
  %vm125 = vmand %vm101, %vm113
  %vm126 = vmand %vm102, %vm114
  %vm127 = vmand %vm103, %vm115
  %vm128 = vmand %vm104, %vm116
  %vm129 = vmand %vm105, %vm117
  %vm130 = vmand %vm106, %vm118
  %v131 = vsel %vm119, 0.0037620636, 0.008726967
  %v132 = vsel %vm120, 0.0037620636, 0.008726967
  %v133 = vsel %vm121, 0.0037620636, 0.008726967
  %v134 = vsel %vm122, 0.0037620636, 0.008726967
  %v135 = vsel %vm123, 0.0037620636, 0.008726967
  %v136 = vsel %vm124, 0.0037620636, 0.008726967
  %v137 = vsel %vm125, 0.0037620636, 0.008726967
  %v138 = vsel %vm126, 0.0037620636, 0.008726967
  %v139 = vsel %vm127, 0.0037620636, 0.008726967
  %v140 = vsel %vm128, 0.0037620636, 0.008726967
  %v141 = vsel %vm129, 0.0037620636, 0.008726967
  %v142 = vsel %vm130, 0.0037620636, 0.008726967
  %v143 = vsel %vm83, 0.00212671, %v131
  %v144 = vsel %vm84, 0.00212671, %v132
  %v145 = vsel %vm85, 0.00212671, %v133
  %v146 = vsel %vm86, 0.00212671, %v134
  %v147 = vsel %vm87, 0.00212671, %v135
  %v148 = vsel %vm88, 0.00212671, %v136
  %v149 = vsel %vm89, 0.00212671, %v137
  %v150 = vsel %vm90, 0.00212671, %v138
  %v151 = vsel %vm91, 0.00212671, %v139
  %v152 = vsel %vm92, 0.00212671, %v140
  %v153 = vsel %vm93, 0.00212671, %v141
  %v154 = vsel %vm94, 0.00212671, %v142
  %v157 = vlaneseq
  %v158 = vshrl.u32 %v157, 7
  %v159 = vsub.s32 0, %v158
  %v160 = vrot.slane %v8, %v159
  %v161 = vlaneseq
  %v162 = vshrl.u32 %v161, 7
  %v163 = vsub.s32 1, %v162
  %v164 = vrot.slane %v8, %v163
  %v165 = vlaneseq
  %v166 = vshrl.u32 %v165, 7
  %v167 = vsub.s32 2, %v166
  %v168 = vrot.slane %v8, %v167
  %v169 = vlaneseq
  %v170 = vshrl.u32 %v169, 7
  %v171 = vsub.s32 3, %v170
  %v172 = vrot.slane %v8, %v171
  %v173 = vlaneseq
  %v174 = vshrl.u32 %v173, 7
  %v175 = vsub.s32 4, %v174
  %v176 = vrot.slane %v8, %v175
  %v177 = vlaneseq
  %v178 = vshrl.u32 %v177, 7
  %v179 = vsub.s32 5, %v178
  %v180 = vrot.slane %v8, %v179
  %v181 = vlaneseq
  %v182 = vshrl.u32 %v181, 7
  %v183 = vsub.s32 6, %v182
  %v184 = vrot.slane %v8, %v183
  %v185 = vlaneseq
  %v186 = vshrl.u32 %v185, 7
  %v187 = vsub.s32 7, %v186
  %v188 = vrot.slane %v8, %v187
  %v189 = vlaneseq
  %v190 = vshrl.u32 %v189, 7
  %v191 = vsub.s32 0, %v190
  %v192 = vrot.slane %v9, %v191
  %v193 = vlaneseq
  %v194 = vshrl.u32 %v193, 7
  %v195 = vsub.s32 1, %v194
  %v196 = vrot.slane %v9, %v195
  %v197 = vlaneseq
  %v198 = vshrl.u32 %v197, 7
  %v199 = vsub.s32 2, %v198
  %v200 = vrot.slane %v9, %v199
  %v201 = vlaneseq
  %v202 = vshrl.u32 %v201, 7
  %v203 = vsub.s32 3, %v202
  %v204 = vrot.slane %v9, %v203
  %v217 = vmul.f32 %v143, %v160
  %v218 = vmul.f32 %v144, %v164
  %v219 = vmul.f32 %v145, %v168
  %v220 = vmul.f32 %v146, %v172
  %v221 = vmul.f32 %v147, %v176
  %v222 = vmul.f32 %v148, %v180
  %v223 = vmul.f32 %v149, %v184
  %v224 = vmul.f32 %v150, %v188
  %v225 = vmul.f32 %v151, %v192
  %v226 = vmul.f32 %v152, %v196
  %v227 = vmul.f32 %v153, %v200
  %v228 = vmul.f32 %v154, %v204
  %v229 = vsel %vm119, 0.0018982124, 0.0
  %v230 = vsel %vm120, 0.0018982124, 0.0
  %v231 = vsel %vm121, 0.0018982124, 0.0
  %v232 = vsel %vm122, 0.0018982124, 0.0
  %v233 = vsel %vm123, 0.0018982124, 0.0
  %v234 = vsel %vm124, 0.0018982124, 0.0
  %v235 = vsel %vm125, 0.0018982124, 0.0
  %v236 = vsel %vm126, 0.0018982124, 0.0
  %v237 = vsel %vm127, 0.0018982124, 0.0
  %v238 = vsel %vm128, 0.0018982124, 0.0
  %v239 = vsel %vm129, 0.0018982124, 0.0
  %v240 = vsel %vm130, 0.0018982124, 0.0
  %v241 = vsel %vm83, 0.0071516, %v229
  %v242 = vsel %vm84, 0.0071516, %v230
  %v243 = vsel %vm85, 0.0071516, %v231
  %v244 = vsel %vm86, 0.0071516, %v232
  %v245 = vsel %vm87, 0.0071516, %v233
  %v246 = vsel %vm88, 0.0071516, %v234
  %v247 = vsel %vm89, 0.0071516, %v235
  %v248 = vsel %vm90, 0.0071516, %v236
  %v249 = vsel %vm91, 0.0071516, %v237
  %v250 = vsel %vm92, 0.0071516, %v238
  %v251 = vsel %vm93, 0.0071516, %v239
  %v252 = vsel %vm94, 0.0071516, %v240
  %253 = vrot.lane.b32.xlu0 %v160, 127
  %v254 = vpop.permute.xlu0 %253
  %255 = vrot.lane.b32.xlu0 %v164, 127
  %v256 = vpop.permute.xlu0 %255
  %257 = vrot.lane.b32.xlu0 %v168, 127
  %v258 = vpop.permute.xlu0 %257
  %259 = vrot.lane.b32.xlu0 %v172, 127
  %v260 = vpop.permute.xlu0 %259
  %261 = vrot.lane.b32.xlu0 %v176, 127
  %v262 = vpop.permute.xlu0 %261
  %263 = vrot.lane.b32.xlu0 %v180, 127
  %v264 = vpop.permute.xlu0 %263
  %265 = vrot.lane.b32.xlu0 %v184, 127
  %v266 = vpop.permute.xlu0 %265
  %267 = vrot.lane.b32.xlu0 %v188, 127
  %v268 = vpop.permute.xlu0 %267
  %269 = vrot.lane.b32.xlu0 %v192, 127
  %v270 = vpop.permute.xlu0 %269
  %271 = vrot.lane.b32.xlu0 %v196, 127
  %v272 = vpop.permute.xlu0 %271
  %273 = vrot.lane.b32.xlu0 %v200, 127
  %v274 = vpop.permute.xlu0 %273
  %275 = vrot.lane.b32.xlu0 %v204, 127
  %v276 = vpop.permute.xlu0 %275
  %vm277 = vcmp.lt.s32.totalorder %v11, 127
  %v278 = vsel %vm277, %v274, %v276
  %v279 = vsel %vm277, %v272, %v274
  %v280 = vsel %vm277, %v270, %v272
  %v281 = vsel %vm277, %v268, %v270
  %v282 = vsel %vm277, %v266, %v268
  %v283 = vsel %vm277, %v264, %v266
  %v284 = vsel %vm277, %v262, %v264
  %v285 = vsel %vm277, %v260, %v262
  %v286 = vsel %vm277, %v258, %v260
  %v287 = vsel %vm277, %v256, %v258
  %v288 = vsel %vm277, %v254, %v256
  %v289 = vsel %vm277, %v276, %v254
  %v290 = vmul.f32 %v241, %v288
  %v291 = vmul.f32 %v242, %v287
  %v292 = vmul.f32 %v243, %v286
  %v293 = vmul.f32 %v244, %v285
  %v294 = vmul.f32 %v245, %v284
  %v295 = vmul.f32 %v246, %v283
  %v296 = vmul.f32 %v247, %v282
  %v297 = vmul.f32 %v248, %v281
  %v298 = vmul.f32 %v249, %v280
  %v299 = vmul.f32 %v250, %v279
  %v300 = vmul.f32 %v251, %v278
  %v301 = vmul.f32 %v252, %v289
  %v302 = vadd.f32 %v217, %v290
  %v303 = vadd.f32 %v218, %v291
  %v304 = vadd.f32 %v219, %v292
  %v305 = vadd.f32 %v220, %v293
  %v306 = vadd.f32 %v221, %v294
  %v307 = vadd.f32 %v222, %v295
  %v308 = vadd.f32 %v223, %v296
  %v309 = vadd.f32 %v224, %v297
  %v310 = vadd.f32 %v225, %v298
  %v311 = vadd.f32 %v226, %v299
  %v312 = vadd.f32 %v227, %v300
  %v313 = vadd.f32 %v228, %v301
  %v314 = vsel %vm83, 0.00072169, 0.0
  %v315 = vsel %vm84, 0.00072169, 0.0
  %v316 = vsel %vm85, 0.00072169, 0.0
  %v317 = vsel %vm86, 0.00072169, 0.0
  %v318 = vsel %vm87, 0.00072169, 0.0
  %v319 = vsel %vm88, 0.00072169, 0.0
  %v320 = vsel %vm89, 0.00072169, 0.0
  %v321 = vsel %vm90, 0.00072169, 0.0
  %v322 = vsel %vm91, 0.00072169, 0.0
  %v323 = vsel %vm92, 0.00072169, 0.0
  %v324 = vsel %vm93, 0.00072169, 0.0
  %v325 = vsel %vm94, 0.00072169, 0.0
  %326 = vrot.lane.b32.xlu0 %v160, 126
  %v327 = vpop.permute.xlu0 %326
  %328 = vrot.lane.b32.xlu0 %v164, 126
  %v329 = vpop.permute.xlu0 %328
  %330 = vrot.lane.b32.xlu0 %v168, 126
  %v331 = vpop.permute.xlu0 %330
  %332 = vrot.lane.b32.xlu0 %v172, 126
  %v333 = vpop.permute.xlu0 %332
  %334 = vrot.lane.b32.xlu0 %v176, 126
  %v335 = vpop.permute.xlu0 %334
  %336 = vrot.lane.b32.xlu0 %v180, 126
  %v337 = vpop.permute.xlu0 %336
  %338 = vrot.lane.b32.xlu0 %v184, 126
  %v339 = vpop.permute.xlu0 %338
  %340 = vrot.lane.b32.xlu0 %v188, 126
  %v341 = vpop.permute.xlu0 %340
  %342 = vrot.lane.b32.xlu0 %v192, 126
  %v343 = vpop.permute.xlu0 %342
  %344 = vrot.lane.b32.xlu0 %v196, 126
  %v345 = vpop.permute.xlu0 %344
  %346 = vrot.lane.b32.xlu0 %v200, 126
  %v347 = vpop.permute.xlu0 %346
  %348 = vrot.lane.b32.xlu0 %v204, 126
  %v349 = vpop.permute.xlu0 %348
  %vm350 = vcmp.lt.s32.totalorder %v11, 126
  %v351 = vsel %vm350, %v347, %v349
  %v352 = vsel %vm350, %v345, %v347
  %v353 = vsel %vm350, %v343, %v345
  %v354 = vsel %vm350, %v341, %v343
  %v355 = vsel %vm350, %v339, %v341
  %v356 = vsel %vm350, %v337, %v339
  %v357 = vsel %vm350, %v335, %v337
  %v358 = vsel %vm350, %v333, %v335
  %v359 = vsel %vm350, %v331, %v333
  %v360 = vsel %vm350, %v329, %v331
  %v361 = vsel %vm350, %v327, %v329
  %v362 = vsel %vm350, %v349, %v327
  %v363 = vmul.f32 %v314, %v361
  %v364 = vmul.f32 %v315, %v360
  %v365 = vmul.f32 %v316, %v359
  %v366 = vmul.f32 %v317, %v358
  %v367 = vmul.f32 %v318, %v357
  %v368 = vmul.f32 %v319, %v356
  %v369 = vmul.f32 %v320, %v355
  %v370 = vmul.f32 %v321, %v354
  %v371 = vmul.f32 %v322, %v353
  %v372 = vmul.f32 %v323, %v352
  %v373 = vmul.f32 %v324, %v351
  %v374 = vmul.f32 %v325, %v362
  %v375 = vadd.f32 %v302, %v363
  %v376 = vadd.f32 %v303, %v364
  %v377 = vadd.f32 %v304, %v365
  %v378 = vadd.f32 %v305, %v366
  %v379 = vadd.f32 %v306, %v367
  %v380 = vadd.f32 %v307, %v368
  %v381 = vadd.f32 %v308, %v369
  %v382 = vadd.f32 %v309, %v370
  %v383 = vadd.f32 %v310, %v371
  %v384 = vadd.f32 %v311, %v372
  %v385 = vadd.f32 %v312, %v373
  %v386 = vadd.f32 %v313, %v374
  %v387 = vsel %vm119, 0.004339377, 0.0010946788
  %v388 = vsel %vm120, 0.004339377, 0.0010946788
  %v389 = vsel %vm121, 0.004339377, 0.0010946788
  %v390 = vsel %vm122, 0.004339377, 0.0010946788
  %v391 = vsel %vm123, 0.004339377, 0.0010946788
  %v392 = vsel %vm124, 0.004339377, 0.0010946788
  %v393 = vsel %vm125, 0.004339377, 0.0010946788
  %v394 = vsel %vm126, 0.004339377, 0.0010946788
  %v395 = vsel %vm127, 0.004339377, 0.0010946788
  %v396 = vsel %vm128, 0.004339377, 0.0010946788
  %v397 = vsel %vm129, 0.004339377, 0.0010946788
  %v398 = vsel %vm130, 0.004339377, 0.0010946788
  %v399 = vsel %vm83, 0.0, %v387
  %v400 = vsel %vm84, 0.0, %v388
  %v401 = vsel %vm85, 0.0, %v389
  %v402 = vsel %vm86, 0.0, %v390
  %v403 = vsel %vm87, 0.0, %v391
  %v404 = vsel %vm88, 0.0, %v392
  %v405 = vsel %vm89, 0.0, %v393
  %v406 = vsel %vm90, 0.0, %v394
  %v407 = vsel %vm91, 0.0, %v395
  %v408 = vsel %vm92, 0.0, %v396
  %v409 = vsel %vm93, 0.0, %v397
  %v410 = vsel %vm94, 0.0, %v398
  %411 = vrot.lane.b32.xlu0 %v160, 1
  %v412 = vpop.permute.xlu0 %411
  %413 = vrot.lane.b32.xlu0 %v164, 1
  %v414 = vpop.permute.xlu0 %413
  %415 = vrot.lane.b32.xlu0 %v168, 1
  %v416 = vpop.permute.xlu0 %415
  %417 = vrot.lane.b32.xlu0 %v172, 1
  %v418 = vpop.permute.xlu0 %417
  %419 = vrot.lane.b32.xlu0 %v176, 1
  %v420 = vpop.permute.xlu0 %419
  %421 = vrot.lane.b32.xlu0 %v180, 1
  %v422 = vpop.permute.xlu0 %421
  %423 = vrot.lane.b32.xlu0 %v184, 1
  %v424 = vpop.permute.xlu0 %423
  %425 = vrot.lane.b32.xlu0 %v188, 1
  %v426 = vpop.permute.xlu0 %425
  %427 = vrot.lane.b32.xlu0 %v192, 1
  %v428 = vpop.permute.xlu0 %427
  %429 = vrot.lane.b32.xlu0 %v196, 1
  %v430 = vpop.permute.xlu0 %429
  %431 = vrot.lane.b32.xlu0 %v200, 1
  %v432 = vpop.permute.xlu0 %431
  %433 = vrot.lane.b32.xlu0 %v204, 1
  %v434 = vpop.permute.xlu0 %433
  %vm435 = vcmp.lt.s32.totalorder %v11, 1
  %v436 = vsel %vm435, %v432, %v434
  %v437 = vsel %vm435, %v430, %v432
  %v438 = vsel %vm435, %v428, %v430
  %v439 = vsel %vm435, %v426, %v428
  %v440 = vsel %vm435, %v424, %v426
  %v441 = vsel %vm435, %v422, %v424
  %v442 = vsel %vm435, %v420, %v422
  %v443 = vsel %vm435, %v418, %v420
  %v444 = vsel %vm435, %v416, %v418
  %v445 = vsel %vm435, %v414, %v416
  %v446 = vsel %vm435, %v412, %v414
  %v447 = vsel %vm435, %v434, %v412
  %v448 = vmul.f32 %v399, %v447
  %v449 = vmul.f32 %v400, %v446
  %v450 = vmul.f32 %v401, %v445
  %v451 = vmul.f32 %v402, %v444
  %v452 = vmul.f32 %v403, %v443
  %v453 = vmul.f32 %v404, %v442
  %v454 = vmul.f32 %v405, %v441
  %v455 = vmul.f32 %v406, %v440
  %v456 = vmul.f32 %v407, %v439
  %v457 = vmul.f32 %v408, %v438
  %v458 = vmul.f32 %v409, %v437
  %v459 = vmul.f32 %v410, %v436
  %v460 = vadd.f32 %v375, %v448
  %v461 = vadd.f32 %v376, %v449
  %v462 = vadd.f32 %v377, %v450
  %v463 = vadd.f32 %v378, %v451
  %v464 = vadd.f32 %v379, %v452
  %v465 = vadd.f32 %v380, %v453
  %v466 = vadd.f32 %v381, %v454
  %v467 = vadd.f32 %v382, %v455
  %v468 = vadd.f32 %v383, %v456
  %v469 = vadd.f32 %v384, %v457
  %v470 = vadd.f32 %v385, %v458
  %v471 = vadd.f32 %v386, %v459
  %v472 = vsel %vm119, 0.0, 0.00017756512
  %v473 = vsel %vm120, 0.0, 0.00017756512
  %v474 = vsel %vm121, 0.0, 0.00017756512
  %v475 = vsel %vm122, 0.0, 0.00017756512
  %v476 = vsel %vm123, 0.0, 0.00017756512
  %v477 = vsel %vm124, 0.0, 0.00017756512
  %v478 = vsel %vm125, 0.0, 0.00017756512
  %v479 = vsel %vm126, 0.0, 0.00017756512
  %v480 = vsel %vm127, 0.0, 0.00017756512
  %v481 = vsel %vm128, 0.0, 0.00017756512
  %v482 = vsel %vm129, 0.0, 0.00017756512
  %v483 = vsel %vm130, 0.0, 0.00017756512
  %v484 = vsel %vm83, 0.0, %v472
  %v485 = vsel %vm84, 0.0, %v473
  %v486 = vsel %vm85, 0.0, %v474
  %v487 = vsel %vm86, 0.0, %v475
  %v488 = vsel %vm87, 0.0, %v476
  %v489 = vsel %vm88, 0.0, %v477
  %v490 = vsel %vm89, 0.0, %v478
  %v491 = vsel %vm90, 0.0, %v479
  %v492 = vsel %vm91, 0.0, %v480
  %v493 = vsel %vm92, 0.0, %v481
  %v494 = vsel %vm93, 0.0, %v482
  %v495 = vsel %vm94, 0.0, %v483
  %496 = vrot.lane.b32.xlu0 %v160, 2
  %v497 = vpop.permute.xlu0 %496
  %498 = vrot.lane.b32.xlu0 %v164, 2
  %v499 = vpop.permute.xlu0 %498
  %500 = vrot.lane.b32.xlu0 %v168, 2
  %v501 = vpop.permute.xlu0 %500
  %502 = vrot.lane.b32.xlu0 %v172, 2
  %v503 = vpop.permute.xlu0 %502
  %504 = vrot.lane.b32.xlu0 %v176, 2
  %v505 = vpop.permute.xlu0 %504
  %506 = vrot.lane.b32.xlu0 %v180, 2
  %v507 = vpop.permute.xlu0 %506
  %508 = vrot.lane.b32.xlu0 %v184, 2
  %v509 = vpop.permute.xlu0 %508
  %510 = vrot.lane.b32.xlu0 %v188, 2
  %v511 = vpop.permute.xlu0 %510
  %512 = vrot.lane.b32.xlu0 %v192, 2
  %v513 = vpop.permute.xlu0 %512
  %514 = vrot.lane.b32.xlu0 %v196, 2
  %v515 = vpop.permute.xlu0 %514
  %516 = vrot.lane.b32.xlu0 %v200, 2
  %v517 = vpop.permute.xlu0 %516
  %518 = vrot.lane.b32.xlu0 %v204, 2
  %v519 = vpop.permute.xlu0 %518
  %vm520 = vcmp.lt.s32.totalorder %v11, 2
  %v521 = vsel %vm520, %v517, %v519
  %v522 = vsel %vm520, %v515, %v517
  %v523 = vsel %vm520, %v513, %v515
  %v524 = vsel %vm520, %v511, %v513
  %v525 = vsel %vm520, %v509, %v511
  %v526 = vsel %vm520, %v507, %v509
  %v527 = vsel %vm520, %v505, %v507
  %v528 = vsel %vm520, %v503, %v505
  %v529 = vsel %vm520, %v501, %v503
  %v530 = vsel %vm520, %v499, %v501
  %v531 = vsel %vm520, %v497, %v499
  %v532 = vsel %vm520, %v519, %v497
  %v533 = vmul.f32 %v484, %v532
  %v534 = vmul.f32 %v485, %v531
  %v535 = vmul.f32 %v486, %v530
  %v536 = vmul.f32 %v487, %v529
  %v537 = vmul.f32 %v488, %v528
  %v538 = vmul.f32 %v489, %v527
  %v539 = vmul.f32 %v490, %v526
  %v540 = vmul.f32 %v491, %v525
  %v541 = vmul.f32 %v492, %v524
  %v542 = vmul.f32 %v493, %v523
  %v543 = vmul.f32 %v494, %v522
  %v544 = vmul.f32 %v495, %v521
  %v545 = vadd.f32 %v460, %v533
  %v546 = vadd.f32 %v461, %v534
  %v547 = vadd.f32 %v462, %v535
  %v548 = vadd.f32 %v463, %v536
  %v549 = vadd.f32 %v464, %v537
  %v550 = vadd.f32 %v465, %v538
  %v551 = vadd.f32 %v466, %v539
  %v552 = vadd.f32 %v467, %v540
  %v553 = vadd.f32 %v468, %v541
  %v554 = vadd.f32 %v469, %v542
  %v555 = vadd.f32 %v470, %v543
  %v556 = vadd.f32 %v471, %v544
  %v557 = vmax.f32 %v545, 1e-06
  %v558 = vmax.f32 %v546, 1e-06
  %v559 = vmax.f32 %v547, 1e-06
  %v560 = vmax.f32 %v548, 1e-06
  %v561 = vmax.f32 %v549, 1e-06
  %v562 = vmax.f32 %v550, 1e-06
  %v563 = vmax.f32 %v551, 1e-06
  %v564 = vmax.f32 %v552, 1e-06
  %v565 = vmax.f32 %v553, 1e-06
  %v566 = vmax.f32 %v554, 1e-06
  %v567 = vmax.f32 %v555, 1e-06
  %v568 = vmax.f32 %v556, 1e-06
  %v569 = vlog2.pop %v557
  %v570 = vmul.f32 %v569, 0.6931472
  %v571 = vlog2.pop %v558
  %v572 = vmul.f32 %v571, 0.6931472
  %v573 = vlog2.pop %v559
  %v574 = vmul.f32 %v573, 0.6931472
  %v575 = vlog2.pop %v560
  %v576 = vmul.f32 %v575, 0.6931472
  %v577 = vlog2.pop %v561
  %v578 = vmul.f32 %v577, 0.6931472
  %v579 = vlog2.pop %v562
  %v580 = vmul.f32 %v579, 0.6931472
  %v581 = vlog2.pop %v563
  %v582 = vmul.f32 %v581, 0.6931472
  %v583 = vlog2.pop %v564
  %v584 = vmul.f32 %v583, 0.6931472
  %v585 = vlog2.pop %v565
  %v586 = vmul.f32 %v585, 0.6931472
  %v587 = vlog2.pop %v566
  %v588 = vmul.f32 %v587, 0.6931472
  %v589 = vlog2.pop %v567
  %v590 = vmul.f32 %v589, 0.6931472
  %v591 = vlog2.pop %v568
  %v592 = vmul.f32 %v591, 0.6931472
  %v593 = vmul.f32 %v570, 0.33333334
  %v594 = vmul.f32 %v572, 0.33333334
  %v595 = vmul.f32 %v574, 0.33333334
  %v596 = vmul.f32 %v576, 0.33333334
  %v597 = vmul.f32 %v578, 0.33333334
  %v598 = vmul.f32 %v580, 0.33333334
  %v599 = vmul.f32 %v582, 0.33333334
  %v600 = vmul.f32 %v584, 0.33333334
  %v601 = vmul.f32 %v586, 0.33333334
  %v602 = vmul.f32 %v588, 0.33333334
  %v603 = vmul.f32 %v590, 0.33333334
  %v604 = vmul.f32 %v592, 0.33333334
  %v605 = vmul.f32 %v593, 1.442695
  %v606 = vpow.pop %v605
  %v607 = vmul.f32 %v594, 1.442695
  %v608 = vpow.pop %v607
  %v609 = vmul.f32 %v595, 1.442695
  %v610 = vpow.pop %v609
  %v611 = vmul.f32 %v596, 1.442695
  %v612 = vpow.pop %v611
  %v613 = vmul.f32 %v597, 1.442695
  %v614 = vpow.pop %v613
  %v615 = vmul.f32 %v598, 1.442695
  %v616 = vpow.pop %v615
  %v617 = vmul.f32 %v599, 1.442695
  %v618 = vpow.pop %v617
  %v619 = vmul.f32 %v600, 1.442695
  %v620 = vpow.pop %v619
  %v621 = vmul.f32 %v601, 1.442695
  %v622 = vpow.pop %v621
  %v623 = vmul.f32 %v602, 1.442695
  %v624 = vpow.pop %v623
  %v625 = vmul.f32 %v603, 1.442695
  %v626 = vpow.pop %v625
  %v627 = vmul.f32 %v604, 1.442695
  %v628 = vpow.pop %v627
  %v629 = vmul.f32 %v545, 7.787037
  %v630 = vmul.f32 %v546, 7.787037
  %v631 = vmul.f32 %v547, 7.787037
  %v632 = vmul.f32 %v548, 7.787037
  %v633 = vmul.f32 %v549, 7.787037
  %v634 = vmul.f32 %v550, 7.787037
  %v635 = vmul.f32 %v551, 7.787037
  %v636 = vmul.f32 %v552, 7.787037
  %v637 = vmul.f32 %v553, 7.787037
  %v638 = vmul.f32 %v554, 7.787037
  %v639 = vmul.f32 %v555, 7.787037
  %v640 = vmul.f32 %v556, 7.787037
  %v641 = vadd.f32 %v629, 0.13793103
  %v642 = vadd.f32 %v630, 0.13793103
  %v643 = vadd.f32 %v631, 0.13793103
  %v644 = vadd.f32 %v632, 0.13793103
  %v645 = vadd.f32 %v633, 0.13793103
  %v646 = vadd.f32 %v634, 0.13793103
  %v647 = vadd.f32 %v635, 0.13793103
  %v648 = vadd.f32 %v636, 0.13793103
  %v649 = vadd.f32 %v637, 0.13793103
  %v650 = vadd.f32 %v638, 0.13793103
  %v651 = vadd.f32 %v639, 0.13793103
  %v652 = vadd.f32 %v640, 0.13793103
  %vm653 = vcmp.gt.f32.partialorder %v545, 0.008856452
  %vm654 = vcmp.gt.f32.partialorder %v546, 0.008856452
  %vm655 = vcmp.gt.f32.partialorder %v547, 0.008856452
  %vm656 = vcmp.gt.f32.partialorder %v548, 0.008856452
  %vm657 = vcmp.gt.f32.partialorder %v549, 0.008856452
  %vm658 = vcmp.gt.f32.partialorder %v550, 0.008856452
  %vm659 = vcmp.gt.f32.partialorder %v551, 0.008856452
  %vm660 = vcmp.gt.f32.partialorder %v552, 0.008856452
  %vm661 = vcmp.gt.f32.partialorder %v553, 0.008856452
  %vm662 = vcmp.gt.f32.partialorder %v554, 0.008856452
  %vm663 = vcmp.gt.f32.partialorder %v555, 0.008856452
  %vm664 = vcmp.gt.f32.partialorder %v556, 0.008856452
  %v665 = vsel %vm653, %v606, %v641
  %v666 = vsel %vm654, %v608, %v642
  %v667 = vsel %vm655, %v610, %v643
  %v668 = vsel %vm656, %v612, %v644
  %v669 = vsel %vm657, %v614, %v645
  %v670 = vsel %vm658, %v616, %v646
  %v671 = vsel %vm659, %v618, %v647
  %v672 = vsel %vm660, %v620, %v648
  %v673 = vsel %vm661, %v622, %v649
  %v674 = vsel %vm662, %v624, %v650
  %v675 = vsel %vm663, %v626, %v651
  %v676 = vsel %vm664, %v628, %v652
  %v677 = vsel %vm119, 500.0, -200.0
  %v678 = vsel %vm120, 500.0, -200.0
  %v679 = vsel %vm121, 500.0, -200.0
  %v680 = vsel %vm122, 500.0, -200.0
  %v681 = vsel %vm123, 500.0, -200.0
  %v682 = vsel %vm124, 500.0, -200.0
  %v683 = vsel %vm125, 500.0, -200.0
  %v684 = vsel %vm126, 500.0, -200.0
  %v685 = vsel %vm127, 500.0, -200.0
  %v686 = vsel %vm128, 500.0, -200.0
  %v687 = vsel %vm129, 500.0, -200.0
  %v688 = vsel %vm130, 500.0, -200.0
  %v689 = vsel %vm83, 116.0, %v677
  %v690 = vsel %vm84, 116.0, %v678
  %v691 = vsel %vm85, 116.0, %v679
  %v692 = vsel %vm86, 116.0, %v680
  %v693 = vsel %vm87, 116.0, %v681
  %v694 = vsel %vm88, 116.0, %v682
  %v695 = vsel %vm89, 116.0, %v683
  %v696 = vsel %vm90, 116.0, %v684
  %v697 = vsel %vm91, 116.0, %v685
  %v698 = vsel %vm92, 116.0, %v686
  %v699 = vsel %vm93, 116.0, %v687
  %v700 = vsel %vm94, 116.0, %v688
  %v701 = vmul.f32 %v689, %v665
  %v702 = vmul.f32 %v690, %v666
  %v703 = vmul.f32 %v691, %v667
  %v704 = vmul.f32 %v692, %v668
  %v705 = vmul.f32 %v693, %v669
  %v706 = vmul.f32 %v694, %v670
  %v707 = vmul.f32 %v695, %v671
  %v708 = vmul.f32 %v696, %v672
  %v709 = vmul.f32 %v697, %v673
  %v710 = vmul.f32 %v698, %v674
  %v711 = vmul.f32 %v699, %v675
  %v712 = vmul.f32 %v700, %v676
  %v713 = vsel %vm119, -500.0, 0.0
  %v714 = vsel %vm120, -500.0, 0.0
  %v715 = vsel %vm121, -500.0, 0.0
  %v716 = vsel %vm122, -500.0, 0.0
  %v717 = vsel %vm123, -500.0, 0.0
  %v718 = vsel %vm124, -500.0, 0.0
  %v719 = vsel %vm125, -500.0, 0.0
  %v720 = vsel %vm126, -500.0, 0.0
  %v721 = vsel %vm127, -500.0, 0.0
  %v722 = vsel %vm128, -500.0, 0.0
  %v723 = vsel %vm129, -500.0, 0.0
  %v724 = vsel %vm130, -500.0, 0.0
  %v725 = vsel %vm83, 0.0, %v713
  %v726 = vsel %vm84, 0.0, %v714
  %v727 = vsel %vm85, 0.0, %v715
  %v728 = vsel %vm86, 0.0, %v716
  %v729 = vsel %vm87, 0.0, %v717
  %v730 = vsel %vm88, 0.0, %v718
  %v731 = vsel %vm89, 0.0, %v719
  %v732 = vsel %vm90, 0.0, %v720
  %v733 = vsel %vm91, 0.0, %v721
  %v734 = vsel %vm92, 0.0, %v722
  %v735 = vsel %vm93, 0.0, %v723
  %v736 = vsel %vm94, 0.0, %v724
  %737 = vrot.lane.b32.xlu0 %v665, 1
  %v738 = vpop.permute.xlu0 %737
  %739 = vrot.lane.b32.xlu0 %v666, 1
  %v740 = vpop.permute.xlu0 %739
  %741 = vrot.lane.b32.xlu0 %v667, 1
  %v742 = vpop.permute.xlu0 %741
  %743 = vrot.lane.b32.xlu0 %v668, 1
  %v744 = vpop.permute.xlu0 %743
  %745 = vrot.lane.b32.xlu0 %v669, 1
  %v746 = vpop.permute.xlu0 %745
  %747 = vrot.lane.b32.xlu0 %v670, 1
  %v748 = vpop.permute.xlu0 %747
  %749 = vrot.lane.b32.xlu0 %v671, 1
  %v750 = vpop.permute.xlu0 %749
  %751 = vrot.lane.b32.xlu0 %v672, 1
  %v752 = vpop.permute.xlu0 %751
  %753 = vrot.lane.b32.xlu0 %v673, 1
  %v754 = vpop.permute.xlu0 %753
  %755 = vrot.lane.b32.xlu0 %v674, 1
  %v756 = vpop.permute.xlu0 %755
  %757 = vrot.lane.b32.xlu0 %v675, 1
  %v758 = vpop.permute.xlu0 %757
  %759 = vrot.lane.b32.xlu0 %v676, 1
  %v760 = vpop.permute.xlu0 %759
  %v761 = vsel %vm435, %v758, %v760
  %v762 = vsel %vm435, %v756, %v758
  %v763 = vsel %vm435, %v754, %v756
  %v764 = vsel %vm435, %v752, %v754
  %v765 = vsel %vm435, %v750, %v752
  %v766 = vsel %vm435, %v748, %v750
  %v767 = vsel %vm435, %v746, %v748
  %v768 = vsel %vm435, %v744, %v746
  %v769 = vsel %vm435, %v742, %v744
  %v770 = vsel %vm435, %v740, %v742
  %v771 = vsel %vm435, %v738, %v740
  %v772 = vsel %vm435, %v760, %v738
  %v773 = vmul.f32 %v725, %v772
  %v774 = vmul.f32 %v726, %v771
  %v775 = vmul.f32 %v727, %v770
  %v776 = vmul.f32 %v728, %v769
  %v777 = vmul.f32 %v729, %v768
  %v778 = vmul.f32 %v730, %v767
  %v779 = vmul.f32 %v731, %v766
  %v780 = vmul.f32 %v732, %v765
  %v781 = vmul.f32 %v733, %v764
  %v782 = vmul.f32 %v734, %v763
  %v783 = vmul.f32 %v735, %v762
  %v784 = vmul.f32 %v736, %v761
  %v785 = vadd.f32 %v701, %v773
  %v786 = vadd.f32 %v702, %v774
  %v787 = vadd.f32 %v703, %v775
  %v788 = vadd.f32 %v704, %v776
  %v789 = vadd.f32 %v705, %v777
  %v790 = vadd.f32 %v706, %v778
  %v791 = vadd.f32 %v707, %v779
  %v792 = vadd.f32 %v708, %v780
  %v793 = vadd.f32 %v709, %v781
  %v794 = vadd.f32 %v710, %v782
  %v795 = vadd.f32 %v711, %v783
  %v796 = vadd.f32 %v712, %v784
  %v797 = vsel %vm119, 0.0, 200.0
  %v798 = vsel %vm120, 0.0, 200.0
  %v799 = vsel %vm121, 0.0, 200.0
  %v800 = vsel %vm122, 0.0, 200.0
  %v801 = vsel %vm123, 0.0, 200.0
  %v802 = vsel %vm124, 0.0, 200.0
  %v803 = vsel %vm125, 0.0, 200.0
  %v804 = vsel %vm126, 0.0, 200.0
  %v805 = vsel %vm127, 0.0, 200.0
  %v806 = vsel %vm128, 0.0, 200.0
  %v807 = vsel %vm129, 0.0, 200.0
  %v808 = vsel %vm130, 0.0, 200.0
  %v809 = vsel %vm83, 0.0, %v797
  %v810 = vsel %vm84, 0.0, %v798
  %v811 = vsel %vm85, 0.0, %v799
  %v812 = vsel %vm86, 0.0, %v800
  %v813 = vsel %vm87, 0.0, %v801
  %v814 = vsel %vm88, 0.0, %v802
  %v815 = vsel %vm89, 0.0, %v803
  %v816 = vsel %vm90, 0.0, %v804
  %v817 = vsel %vm91, 0.0, %v805
  %v818 = vsel %vm92, 0.0, %v806
  %v819 = vsel %vm93, 0.0, %v807
  %v820 = vsel %vm94, 0.0, %v808
  %821 = vrot.lane.b32.xlu0 %v665, 2
  %v822 = vpop.permute.xlu0 %821
  %823 = vrot.lane.b32.xlu0 %v666, 2
  %v824 = vpop.permute.xlu0 %823
  %825 = vrot.lane.b32.xlu0 %v667, 2
  %v826 = vpop.permute.xlu0 %825
  %827 = vrot.lane.b32.xlu0 %v668, 2
  %v828 = vpop.permute.xlu0 %827
  %829 = vrot.lane.b32.xlu0 %v669, 2
  %v830 = vpop.permute.xlu0 %829
  %831 = vrot.lane.b32.xlu0 %v670, 2
  %v832 = vpop.permute.xlu0 %831
  %833 = vrot.lane.b32.xlu0 %v671, 2
  %v834 = vpop.permute.xlu0 %833
  %835 = vrot.lane.b32.xlu0 %v672, 2
  %v836 = vpop.permute.xlu0 %835
  %837 = vrot.lane.b32.xlu0 %v673, 2
  %v838 = vpop.permute.xlu0 %837
  %839 = vrot.lane.b32.xlu0 %v674, 2
  %v840 = vpop.permute.xlu0 %839
  %841 = vrot.lane.b32.xlu0 %v675, 2
  %v842 = vpop.permute.xlu0 %841
  %843 = vrot.lane.b32.xlu0 %v676, 2
  %v844 = vpop.permute.xlu0 %843
  %v845 = vsel %vm520, %v842, %v844
  %v846 = vsel %vm520, %v840, %v842
  %v847 = vsel %vm520, %v838, %v840
  %v848 = vsel %vm520, %v836, %v838
  %v849 = vsel %vm520, %v834, %v836
  %v850 = vsel %vm520, %v832, %v834
  %v851 = vsel %vm520, %v830, %v832
  %v852 = vsel %vm520, %v828, %v830
  %v853 = vsel %vm520, %v826, %v828
  %v854 = vsel %vm520, %v824, %v826
  %v855 = vsel %vm520, %v822, %v824
  %v856 = vsel %vm520, %v844, %v822
  %v857 = vmul.f32 %v809, %v856
  %v858 = vmul.f32 %v810, %v855
  %v859 = vmul.f32 %v811, %v854
  %v860 = vmul.f32 %v812, %v853
  %v861 = vmul.f32 %v813, %v852
  %v862 = vmul.f32 %v814, %v851
  %v863 = vmul.f32 %v815, %v850
  %v864 = vmul.f32 %v816, %v849
  %v865 = vmul.f32 %v817, %v848
  %v866 = vmul.f32 %v818, %v847
  %v867 = vmul.f32 %v819, %v846
  %v868 = vmul.f32 %v820, %v845
  %v869 = vadd.f32 %v785, %v857
  %v870 = vadd.f32 %v786, %v858
  %v871 = vadd.f32 %v787, %v859
  %v872 = vadd.f32 %v788, %v860
  %v873 = vadd.f32 %v789, %v861
  %v874 = vadd.f32 %v790, %v862
  %v875 = vadd.f32 %v791, %v863
  %v876 = vadd.f32 %v792, %v864
  %v877 = vadd.f32 %v793, %v865
  %v878 = vadd.f32 %v794, %v866
  %v879 = vadd.f32 %v795, %v867
  %v880 = vadd.f32 %v796, %v868
  %v881 = vsel %vm83, -16.0, 0.0
  %v882 = vsel %vm84, -16.0, 0.0
  %v883 = vsel %vm85, -16.0, 0.0
  %v884 = vsel %vm86, -16.0, 0.0
  %v885 = vsel %vm87, -16.0, 0.0
  %v886 = vsel %vm88, -16.0, 0.0
  %v887 = vsel %vm89, -16.0, 0.0
  %v888 = vsel %vm90, -16.0, 0.0
  %v889 = vsel %vm91, -16.0, 0.0
  %v890 = vsel %vm92, -16.0, 0.0
  %v891 = vsel %vm93, -16.0, 0.0
  %v892 = vsel %vm94, -16.0, 0.0
  %v893 = vadd.f32 %v869, %v881
  %v894 = vadd.f32 %v870, %v882
  %v895 = vadd.f32 %v871, %v883
  %v896 = vadd.f32 %v872, %v884
  %v897 = vadd.f32 %v873, %v885
  %v898 = vadd.f32 %v874, %v886
  %v899 = vadd.f32 %v875, %v887
  %v900 = vadd.f32 %v876, %v888
  %v901 = vadd.f32 %v877, %v889
  %v902 = vadd.f32 %v878, %v890
  %v903 = vadd.f32 %v879, %v891
  %v904 = vadd.f32 %v880, %v892
  %v917 = vcombine.low %v893, %v894
  %v918 = vcombine.low %v895, %v896
  %v919 = vcombine.low %v897, %v898
  %v920 = vcombine.low %v899, %v900
  %v922 = vunpack.c.l.s4 1966171168
  %v923 = vunpack.c.0.s8 %v922
  %v924 = vlaneseq
  %v925 = vshrl.u32 %v924, 7
  %v926 = vsub.s32 %v923, %v925
  %v927 = vrot.slane %v917, %v926
  %v929 = vunpack.c.l.s4 1966171168
  %v930 = vunpack.c.0.s8 %v929
  %v931 = vlaneseq
  %v932 = vshrl.u32 %v931, 7
  %v933 = vsub.s32 %v930, %v932
  %v934 = vrot.slane %v918, %v933
  %v936 = vunpack.c.l.s4 1966171168
  %v937 = vunpack.c.0.s8 %v936
  %v938 = vlaneseq
  %v939 = vshrl.u32 %v938, 7
  %v940 = vsub.s32 %v937, %v939
  %v941 = vrot.slane %v919, %v940
  %v943 = vunpack.c.l.s4 1966171168
  %v944 = vunpack.c.0.s8 %v943
  %v945 = vlaneseq
  %v946 = vshrl.u32 %v945, 7
  %v947 = vsub.s32 %v944, %v946
  %v948 = vrot.slane %v920, %v947
  %v949 = vcombine.low %v927, %v934
  %v950 = vcombine.low %v941, %v948
  %v952 = vunpack.c.l.s4 1966171168
  %v953 = vunpack.c.0.s8 %v952
  %v954 = vlaneseq
  %v955 = vshrl.u32 %v954, 7
  %v956 = vsub.s32 %v953, %v955
  %v957 = vrot.slane %v949, %v956
  %v959 = vunpack.c.l.s4 1966171168
  %v960 = vunpack.c.0.s8 %v959
  %v961 = vlaneseq
  %v962 = vshrl.u32 %v961, 7
  %v963 = vsub.s32 %v960, %v962
  %v964 = vrot.slane %v950, %v963
  %v965 = vcombine.low %v957, %v964
  %v966 = vcombine.low %v901, %v902
  %v967 = vcombine.low %v903, %v904
  %v969 = vunpack.c.l.s4 1966171168
  %v970 = vunpack.c.0.s8 %v969
  %v971 = vlaneseq
  %v972 = vshrl.u32 %v971, 7
  %v973 = vsub.s32 %v970, %v972
  %v974 = vrot.slane %v966, %v973
  %v976 = vunpack.c.l.s4 1966171168
  %v977 = vunpack.c.0.s8 %v976
  %v978 = vlaneseq
  %v979 = vshrl.u32 %v978, 7
  %v980 = vsub.s32 %v977, %v979
  %v981 = vrot.slane %v967, %v980
  %v982 = vcombine.low %v974, %v981
  %v984 = vunpack.c.l.s4 1966171168
  %v985 = vunpack.c.0.s8 %v984
  %v986 = vlaneseq
  %v987 = vshrl.u32 %v986, 7
  %v988 = vsub.s32 %v985, %v987
  %v989 = vrot.slane %v982, %v988
  %992 = vst [vmem:[%s1] sm:$0xff] %v965
  %v993 = vlaneseq
  %vm994 = vcmp.ge.s32.totalorder %v993, 0
  %vm995 = vcmp.lt.s32.totalorder %v993, 512
  %vm996 = vmand %vm994, %vm995
  %997 = vst.msk [vmem:[%s1 + $0x8] sm:$0xf] %vm996, %v989
  // Predicated region
  $region6: #{rgb_to_cielab.1} parent=0 // pred_check
    _
  $region7: #{rgb_to_cielab.1} parent=0 // pred_check_branch
    %999 = sbr.rel (0) target = $region9
  $region8: #{rgb_to_cielab.1} parent=0 // pred_region
    _
  $region9: #{rgb_to_cielab.1} parent=0 // pred_fallthru
    _
  // Predicated region
  $region10: #{rgb_to_cielab.1} parent=0 // pred_check
    _
  $region11: #{rgb_to_cielab.1} parent=0 // pred_check_branch
    %1001 = sbr.rel (0) target = $region13
  $region12: #{rgb_to_cielab.1} parent=0 // pred_region
    _
  $region13: #{rgb_to_cielab.1} parent=0 // pred_fallthru
    _

</llo_original>
